<compile_context>
chip_gen: v7x
topology: tpu7x:2x2x1
jax: 0.10.0
libtpu: 0.0.40
codegen_flags: <defaults>
</compile_context>

<pallas_src>
import functools

import jax
import jax.numpy as jnp
from jax.experimental import pallas as pl
from jax.experimental.pallas import tpu as pltpu


def _message_norm_kernel(scale_ref, x_ref, msg_ref, o_ref):
    # scale_ref: SMEM ref of shape (1,), float32
    # x_ref / msg_ref / o_ref: VMEM tiles of shape (TM, F)
    msg = msg_ref[...].astype(jnp.float32)
    x = x_ref[...].astype(jnp.float32)

    # Row-wise squared norms -> (TM, 1) columns (cheap XLU reductions).
    msg_sq = jnp.sum(msg * msg, axis=-1, keepdims=True)
    x_sq = jnp.sum(x * x, axis=-1, keepdims=True)

    # 1 / max(||msg||, 1e-12) == rsqrt(max(msg_sq, 1e-24))  (sqrt is monotone).
    inv_msg_norm = jax.lax.rsqrt(jnp.maximum(msg_sq, 1e-24))
    x_norm = jnp.sqrt(x_sq)

    # Fuse everything into one (TM, 1) broadcast factor -> single big multiply.
    factor = x_norm * inv_msg_norm * scale_ref[0]
    o_ref[...] = (msg * factor).astype(o_ref.dtype)


_ROW_ALIGN = 16  # multiple of 8 (f32 sublanes) and 16 (bf16 sublanes)


def _plan_tiles(n: int, f: int, itemsize: int):
    """Pick a row-tile size and the padded row count.

    VMEM budget: 3 arrays (x, msg, out) x 2 pipeline buffers x tile bytes plus
    f32 temporaries, kept under the smallest default scoped-VMEM limit
    (16 MiB on v5e; 32 MiB default on v6e/v7x; 64 MiB physical on v7x).
    """
    budget = 12 << 20
    bytes_per_row = 3 * 2 * f * itemsize + 4 * f * 4  # dbl-buffered I/O + f32 temps
    tm = min(2048, max(_ROW_ALIGN, budget // max(bytes_per_row, 1)))
    tm = max(_ROW_ALIGN, (tm // _ROW_ALIGN) * _ROW_ALIGN)

    # Keep at least 2 grid steps when the problem is big enough so both
    # v7x TensorCores get work (the single grid axis is "parallel").
    n_min = ((n + _ROW_ALIGN - 1) // _ROW_ALIGN) * _ROW_ALIGN
    if n_min >= 2 * _ROW_ALIGN:
        tm = min(tm, max(_ROW_ALIGN, (n_min // 2 // _ROW_ALIGN) * _ROW_ALIGN))
    else:
        tm = _ROW_ALIGN

    n_pad = ((n + tm - 1) // tm) * tm
    return tm, n_pad


@functools.partial(jax.jit, static_argnames=())
def message_norm(x: jax.Array, msg: jax.Array, scale: jax.Array) -> jax.Array:
    """x, msg: [N, F]; scale: [1] (learnable in the PyTorch module) -> [N, F]."""
    N, F = x.shape
    assert msg.shape == (N, F)

    tm, n_pad = _plan_tiles(N, F, jnp.dtype(x.dtype).itemsize)
    pad = n_pad - N
    # Zero-padding is safe: zero rows produce factor * 0 = 0 and are sliced off.
    x_p = jnp.pad(x, ((0, pad), (0, 0))) if pad else x
    msg_p = jnp.pad(msg, ((0, pad), (0, 0))) if pad else msg
    scale = jnp.asarray(scale, dtype=jnp.float32).reshape((1,))

    grid = (n_pad // tm,)
    out = pl.pallas_call(
        _message_norm_kernel,
        out_shape=jax.ShapeDtypeStruct((n_pad, F), x.dtype),
        grid=grid,
        in_specs=[
            pl.BlockSpec(memory_space=pltpu.MemorySpace.SMEM),  # scale (1,)
            pl.BlockSpec((tm, F), lambda i: (i, 0)),            # x
            pl.BlockSpec((tm, F), lambda i: (i, 0)),            # msg
        ],
        out_specs=pl.BlockSpec((tm, F), lambda i: (i, 0)),
        compiler_params=pltpu.CompilerParams(
            dimension_semantics=("parallel",),
        ),
    )(scale, x_p, msg_p)

    return out[:N] if pad else out


if __name__ == "__main__":
    key = jax.random.PRNGKey(0)
    kx, kmsg = jax.random.split(key)

    # Small node-feature matrix; N deliberately NOT a tile multiple to
    # exercise the wrapper-side padding path.
    N, F = 100, 64
    x = jax.random.normal(kx, (N, F), dtype=jnp.float32)
    msg = jax.random.normal(kmsg, (N, F), dtype=jnp.float32)

    # MessageNorm.__init__ / reset_parameters: scale = [1.0]
    # (learn_scale only toggles requires_grad; forward math is identical)
    scale = jnp.array([1.0], dtype=jnp.float32)

    out = message_norm(x, msg, scale)
    out = jax.block_until_ready(out)
    assert out.shape == (N, F) and out.dtype == x.dtype

    # Reference check in plain JAX (same semantics as the PyTorch forward).
    msg_n = msg / jnp.maximum(
        jnp.sqrt(jnp.sum(msg * msg, axis=-1, keepdims=True)), 1e-12
    )
    x_norm = jnp.sqrt(jnp.sum(x * x, axis=-1, keepdims=True))
    ref = msg_n * x_norm * scale[0]
    assert jnp.allclose(out, ref, atol=1e-5, rtol=1e-5)

    print("KERNEL_OK")
</pallas_src>

<mosaic_0001>
module attributes {stable_mosaic.version = 11 : i64} {
  func.func @_message_norm_kernel(%arg0: i32, %arg1: memref<1xf32, #tpu.memory_space<smem>>, %arg2: memref<48x64xf32, #tpu.memory_space<vmem>>, %arg3: memref<48x64xf32, #tpu.memory_space<vmem>>, %arg4: memref<48x64xf32, #tpu.memory_space<vmem>>) attributes {dimension_semantics = [#tpu.dimension_semantics<parallel>], iteration_bounds = array<i64: 3>, scalar_prefetch = 0 : i64, scratch_operands = 0 : i64, tpu.core_type = #tpu.core_type<tc>, window_params = [{transform_indices = @transform_0, window_bounds = array<i64: 1>}, {transform_indices = @transform_1, window_bounds = array<i64: 48, 64>}, {transform_indices = @transform_2, window_bounds = array<i64: 48, 64>}, {transform_indices = @transform_3, window_bounds = array<i64: 48, 64>}]} {
    %c0 = arith.constant 0 : index
    %c0_0 = arith.constant 0 : index
    %0 = vector.load %arg3[%c0, %c0_0] : memref<48x64xf32, #tpu.memory_space<vmem>>, vector<48x64xf32>
    %c0_1 = arith.constant 0 : index
    %c0_2 = arith.constant 0 : index
    %1 = vector.load %arg2[%c0_1, %c0_2] : memref<48x64xf32, #tpu.memory_space<vmem>>, vector<48x64xf32>
    %2 = arith.mulf %0, %0 : vector<48x64xf32>
    %cst = arith.constant dense<0.000000e+00> : vector<48xf32>
    %3 = vector.multi_reduction <add>, %2, %cst [1] : vector<48x64xf32> to vector<48xf32>
    %4 = vector.shape_cast %3 : vector<48xf32> to vector<48x1xf32>
    %5 = arith.mulf %1, %1 : vector<48x64xf32>
    %cst_3 = arith.constant dense<0.000000e+00> : vector<48xf32>
    %6 = vector.multi_reduction <add>, %5, %cst_3 [1] : vector<48x64xf32> to vector<48xf32>
    %7 = vector.shape_cast %6 : vector<48xf32> to vector<48x1xf32>
    %cst_4 = arith.constant 1.000000e-24 : f32
    %8 = vector.broadcast %cst_4 : f32 to vector<48x1xf32>
    %9 = arith.maximumf %4, %8 : vector<48x1xf32>
    %10 = math.rsqrt %9 : vector<48x1xf32>
    %11 = math.sqrt %7 : vector<48x1xf32>
    %12 = arith.mulf %11, %10 : vector<48x1xf32>
    %c0_5 = arith.constant 0 : index
    %13 = memref.load %arg1[%c0_5] : memref<1xf32, #tpu.memory_space<smem>>
    %14 = vector.broadcast %13 : f32 to vector<48x1xf32>
    %15 = arith.mulf %12, %14 : vector<48x1xf32>
    %16 = vector.broadcast %15 : vector<48x1xf32> to vector<48x64xf32>
    %17 = arith.mulf %0, %16 : vector<48x64xf32>
    %c0_6 = arith.constant 0 : index
    %c0_7 = arith.constant 0 : index
    %18 = vector.load %arg4[%c0_6, %c0_7] : memref<48x64xf32, #tpu.memory_space<vmem>>, vector<48x64xf32>
    tpu.vector_store %arg4[%c0_6, %c0_7], %17 {strides = array<i32>} : memref<48x64xf32, #tpu.memory_space<vmem>>, vector<48x64xf32>,
    return
  }
  func.func @transform_0(%arg0: i32) -> i32 {
    %c0_i32 = arith.constant 0 : i32
    %c0_i32_0 = arith.constant 0 : i32
    return %c0_i32 : i32
  }
  func.func @transform_1(%arg0: i32) -> (i32, i32) {
    %c0_i32 = arith.constant 0 : i32
    %c0_i32_0 = arith.constant 0 : i32
    return %arg0, %c0_i32 : i32, i32
  }
  func.func @transform_2(%arg0: i32) -> (i32, i32) {
    %c0_i32 = arith.constant 0 : i32
    %c0_i32_0 = arith.constant 0 : i32
    return %arg0, %c0_i32 : i32, i32
  }
  func.func @transform_3(%arg0: i32) -> (i32, i32) {
    %c0_i32 = arith.constant 0 : i32
    %c0_i32_0 = arith.constant 0 : i32
    return %arg0, %c0_i32 : i32, i32
  }
}

</mosaic_0001>

<llo_original>
// kernel: message_norm.1
$region0: #{message_norm.1}
  #allocation0 [shape = 'u32[]', space=smem, size = 0x4, offset = 0x4, fixed_abs, tag = 'smem constant byte address 0x4 - core index']
  #allocation1 [shape = 'u32[144,128]{1,0:T(1,128)}', space=vmem, size = 0x12000, scoped, tag = 'internal scratch']
  #allocation2 [shape = 'f32[1]{0:T(128)S(6)}', space=smem, size = 0x200, scoped, tag = 'scoped memory for message_norm.1']
  %s0 = inlined_call_operand.<no memory space> [shape: f32[1], index: 0, kind: input, shape index: {}]
  %s1 = inlined_call_operand.vmem [shape: f32[144,64], index: 1, kind: input, shape index: {}]
  %s2 = inlined_call_operand.vmem [shape: f32[144,64], index: 2, kind: input, shape index: {}]
  %s3 = inlined_call_operand.vmem [shape: f32[144,64], index: 3, kind: output, shape index: {}]
  %s4 = sld [smem:[#allocation0]]
  $region45: #{message_norm.1} parent=0
    _
  %s6 = ssub.s32 1, %s4
  %s7 = scalar_select 0, %s6, %s4
  %8 = sst [smem:[#allocation2]] %s0
  loop: start=0, step=1, limit=5
  $region2: #{message_norm.1} parent=0 // loop_pre_header
    _
  $region3: #{message_norm.1} parent=0 // loop_header
    %s10 = sphi 0, %s14
    %p11 = scmp.ge.s32.totalorder %s10, 5
    %s18 = sphi 0, %s18
    %s20 = sphi 0, %s18
    %s21 = sphi 0, %s20
    %s35 = sphi 0, %s21
    %s41 = sphi 0, %s43
    %s44 = sphi 0, %s41
    %s45 = sphi 0, %s44
    %s61 = sphi 0, %s45
    %s67 = sphi 0, %s69
    %s70 = sphi 0, %s67
    %s71 = sphi 0, %s70
    %s87 = sphi 0, %s71
    %s93 = sphi 0, %s95
    %s96 = sphi 0, %s93
    %s97 = sphi 0, %s96
    %s113 = sphi 0, %s97
  $region4: #{message_norm.1} parent=0 // loop_header_branch
    %13 = sbr.rel (%p11) target = $region8
  $region5: #{message_norm.1} parent=0 // loop_body
    %s15 = ssub.s32 %s10, 1
    %s16 = ssub.s32 %s10, 2
    %s17 = sadd.s32 %s10, 1
    %s19 = sadd.s32 %s18, 1
    %p22 = scmp.eq.s32.totalorder %s10, 2
    %p23 = scmp.ne.s32.totalorder %s18, %s20
    %p24 = scmp.eq.s32.totalorder %s10, 0
    %p25 = por %p23, %p24
    %p26 = scmp.ne.s32.totalorder %s18, %s20
    %p27 = scmp.eq.s32.totalorder %s15, 2
    %p28 = por %p26, %p27
    %p29 = scmp.ne.s32.totalorder %s20, %s21
    %p30 = scmp.eq.s32.totalorder %s15, 0
    %p31 = por %p29, %p30
    %p32 = scmp.ne.s32.totalorder %s20, %s21
    %p33 = scmp.eq.s32.totalorder %s16, 2
    %p34 = por %p32, %p33
    %p36 = scmp.ne.s32.totalorder %s21, %s35
    %p37 = scmp.eq.s32.totalorder %s16, 0
    %p38 = por %p36, %p37
    %s39 = ssub.s32 %s10, %s17
    %p40 = scmp.eq.s32.totalorder %s39, 0
    %s42 = sadd.s32 %s41, 1
    %s43 = scalar_select %p40, %s41, %s42
    %p46 = pneg %p40
    %p47 = scmp.eq.s32.totalorder %s10, 2
    %p48 = por %p46, %p47
    %p49 = scmp.ne.s32.totalorder %s41, %s44
    %p50 = scmp.eq.s32.totalorder %s10, 0
    %p51 = por %p49, %p50
    %p52 = scmp.ne.s32.totalorder %s41, %s44
    %p53 = scmp.eq.s32.totalorder %s15, 2
    %p54 = por %p52, %p53
    %p55 = scmp.ne.s32.totalorder %s44, %s45
    %p56 = scmp.eq.s32.totalorder %s15, 0
    %p57 = por %p55, %p56
    %p58 = scmp.ne.s32.totalorder %s44, %s45
    %p59 = scmp.eq.s32.totalorder %s16, 2
    %p60 = por %p58, %p59
    %p62 = scmp.ne.s32.totalorder %s45, %s61
    %p63 = scmp.eq.s32.totalorder %s16, 0
    %p64 = por %p62, %p63
    %s65 = ssub.s32 %s10, %s17
    %p66 = scmp.eq.s32.totalorder %s65, 0
    %s68 = sadd.s32 %s67, 1
    %s69 = scalar_select %p66, %s67, %s68
    %p72 = pneg %p66
    %p73 = scmp.eq.s32.totalorder %s10, 2
    %p74 = por %p72, %p73
    %p75 = scmp.ne.s32.totalorder %s67, %s70
    %p76 = scmp.eq.s32.totalorder %s10, 0
    %p77 = por %p75, %p76
    %p78 = scmp.ne.s32.totalorder %s67, %s70
    %p79 = scmp.eq.s32.totalorder %s15, 2
    %p80 = por %p78, %p79
    %p81 = scmp.ne.s32.totalorder %s70, %s71
    %p82 = scmp.eq.s32.totalorder %s15, 0
    %p83 = por %p81, %p82
    %p84 = scmp.ne.s32.totalorder %s70, %s71
    %p85 = scmp.eq.s32.totalorder %s16, 2
    %p86 = por %p84, %p85
    %p88 = scmp.ne.s32.totalorder %s71, %s87
    %p89 = scmp.eq.s32.totalorder %s16, 0
    %p90 = por %p88, %p89
    %s91 = ssub.s32 %s10, %s17
    %p92 = scmp.eq.s32.totalorder %s91, 0
    %s94 = sadd.s32 %s93, 1
    %s95 = scalar_select %p92, %s93, %s94
    %p98 = pneg %p92
    %p99 = scmp.eq.s32.totalorder %s10, 2
    %p100 = por %p98, %p99
    %p101 = scmp.ne.s32.totalorder %s93, %s96
    %p102 = scmp.eq.s32.totalorder %s10, 0
    %p103 = por %p101, %p102
    %p104 = scmp.ne.s32.totalorder %s93, %s96
    %p105 = scmp.eq.s32.totalorder %s15, 2
    %p106 = por %p104, %p105
    %p107 = scmp.ne.s32.totalorder %s96, %s97
    %p108 = scmp.eq.s32.totalorder %s15, 0
    %p109 = por %p107, %p108
    %p110 = scmp.ne.s32.totalorder %s96, %s97
    %p111 = scmp.eq.s32.totalorder %s16, 2
    %p112 = por %p110, %p111
    %p114 = scmp.ne.s32.totalorder %s97, %s113
    %p115 = scmp.eq.s32.totalorder %s16, 0
    %p116 = por %p114, %p115
    %p117 = scmp.le.s32.totalorder 1, %s10
    %p118 = scmp.lt.s32.totalorder %s10, 4
    %p119 = pnand %p117, %p118
    %p120 = pneg %p119
    // Predicated region
    $region9: #{message_norm.1} parent=5 // pred_check
      _
    $region10: #{message_norm.1} parent=5 // pred_check_branch
      %122 = sbr.rel (%p119) target = $region12
    $region11: #{message_norm.1} parent=5 // pred_region
      %s123 = ssub.s32 %s10, 1
      // Predicated region
      $region13: #{message_norm.1} parent=11 // pred_check
        %p124 = pneg %p31
      $region14: #{message_norm.1} parent=11 // pred_check_branch
        %126 = sbr.rel (%p124) target = $region16
      $region15: #{message_norm.1} parent=11 // pred_region
        _
      $region16: #{message_norm.1} parent=11 // pred_fallthru
        _
    $region12: #{message_norm.1} parent=5 // pred_fallthru
      _
    %p127 = scmp.lt.s32.totalorder %s10, 3
    // Predicated region
    $region17: #{message_norm.1} parent=5 // pred_check
      %p128 = pneg %p127
    $region18: #{message_norm.1} parent=5 // pred_check_branch
      %130 = sbr.rel (%p128) target = $region20
    $region19: #{message_norm.1} parent=5 // pred_region
      // Predicated region
      $region21: #{message_norm.1} parent=19 // pred_check
        %p131 = pneg %p51
      $region22: #{message_norm.1} parent=19 // pred_check_branch
        %133 = sbr.rel (%p131) target = $region24
      $region23: #{message_norm.1} parent=19 // pred_region
        %s134 = smul.u32 6, %s10
        %p135 = scmp.lt.s32.totalorder %s134, 17
        %s136 = scalar_select %p135, %s134, 17
        %s137 = smul.addr %s136, 8
        %s138 = scalar_lea.vmem %s1, %s137
        %s139 = smul.u32 6, %s10
      $region24: #{message_norm.1} parent=19 // pred_fallthru
        _
      // Predicated region
      $region25: #{message_norm.1} parent=19 // pred_check
        %p140 = pneg %p77
      $region26: #{message_norm.1} parent=19 // pred_check_branch
        %142 = sbr.rel (%p140) target = $region28
      $region27: #{message_norm.1} parent=19 // pred_region
        %s143 = smul.u32 6, %s10
        %p144 = scmp.lt.s32.totalorder %s143, 17
        %s145 = scalar_select %p144, %s143, 17
        %s146 = smul.addr %s145, 8
        %s147 = scalar_lea.vmem %s2, %s146
        %s148 = smul.u32 6, %s10
      $region28: #{message_norm.1} parent=19 // pred_fallthru
        _
    $region20: #{message_norm.1} parent=5 // pred_fallthru
      _
    %p149 = scmp.le.s32.totalorder 1, %s10
    %p150 = scmp.lt.s32.totalorder %s10, 4
    %p151 = pnand %p149, %p150
    %p152 = pneg %p151
    // Predicated region
    $region29: #{message_norm.1} parent=5 // pred_check
      _
    $region30: #{message_norm.1} parent=5 // pred_check_branch
      %154 = sbr.rel (%p151) target = $region32
    $region31: #{message_norm.1} parent=5 // pred_region
      %s155 = ssub.s32 %s10, 1
      %p156 = pneg %p31
      %p157 = pneg %p28
      %s158 = smul.u32 6, %s15
      %p159 = scmp.lt.s32.totalorder %s158, 17
      %s160 = scalar_select %p159, %s158, 17
      %s161 = smul.addr %s160, 8
      %s162 = scalar_lea.vmem %s1, %s161
      %p163 = pneg %p57
      %p164 = pneg %p54
      %s165 = smul.u32 6, %s15
      %p166 = scmp.lt.s32.totalorder %s165, 17
      %s167 = scalar_select %p166, %s165, 17
      %s168 = smul.addr %s167, 8
      %s169 = scalar_lea.vmem %s2, %s168
      %p170 = pneg %p83
      %p171 = pneg %p80
      %p172 = pneg %p109
      %p173 = pneg %p106
      %s174 = smul.u32 6, %s15
      %p175 = scmp.lt.s32.totalorder %s174, 17
      %s176 = scalar_select %p175, %s174, 17
      %s177 = smul.addr %s176, 8
      %s178 = scalar_lea.vmem %s3, %s177
      %s179 = smul.u32 6, %s15
      %p180 = scmp.lt.s32.totalorder %s179, 17
      %s181 = scalar_select %p180, %s179, 17
      %s182 = smul.addr %s181, 8
      %s183 = scalar_lea.vmem %s1, %s182
      %s184 = smul.u32 6, %s15
      %s185 = smul.u32 6, %s15
      %p186 = scmp.lt.s32.totalorder %s185, 17
      %s187 = scalar_select %p186, %s185, 17
      %s188 = smul.addr %s187, 8
      %s189 = scalar_lea.vmem %s2, %s188
      %s190 = smul.u32 6, %s15
      %s191 = smul.u32 6, %s15
      %p192 = scmp.lt.s32.totalorder %s191, 17
      %s193 = scalar_select %p192, %s191, 17
      %s194 = smul.addr %s193, 8
      %s195 = scalar_lea.vmem %s3, %s194
      %s196 = smul.u32 6, %s15
      %v197 = vld [vmem:[%s189] sm:$0xff]
      %v198 = vld [vmem:[%s189 + $0x8] sm:$0xff]
      %v199 = vld [vmem:[%s189 + $0x10] sm:$0xff]
      %v200 = vld [vmem:[%s189 + $0x18] sm:$0xff]
      %v201 = vld [vmem:[%s189 + $0x20] sm:$0xff]
      %v202 = vld [vmem:[%s189 + $0x28] sm:$0xff]
      %v203 = vld [vmem:[%s183] sm:$0xff]
      %v204 = vld [vmem:[%s183 + $0x8] sm:$0xff]
      %v205 = vld [vmem:[%s183 + $0x10] sm:$0xff]
      %v206 = vld [vmem:[%s183 + $0x18] sm:$0xff]
      %v207 = vld [vmem:[%s183 + $0x20] sm:$0xff]
      %v208 = vld [vmem:[%s183 + $0x28] sm:$0xff]
      %v209 = vmul.f32 %v197, %v197
      %v210 = vmul.f32 %v198, %v198
      %v211 = vmul.f32 %v199, %v199
      %v212 = vmul.f32 %v200, %v200
      %v213 = vmul.f32 %v201, %v201
      %v214 = vmul.f32 %v202, %v202
      %vm215 = vcmask 523264
      %v216 = vsel %vm215, %v209, 0.0
      %217 = vadd.xlane.f32.xlu0 %v216
      %v218 = vpop.xlane.xlu0 %217
      %v219 = vsel %vm215, %v210, 0.0
      %220 = vadd.xlane.f32.xlu0 %v219
      %v221 = vpop.xlane.xlu0 %220
      %v222 = vsel %vm215, %v211, 0.0
      %223 = vadd.xlane.f32.xlu0 %v222
      %v224 = vpop.xlane.xlu0 %223
      %v225 = vsel %vm215, %v212, 0.0
      %226 = vadd.xlane.f32.xlu0 %v225
      %v227 = vpop.xlane.xlu0 %226
      %v228 = vsel %vm215, %v213, 0.0
      %229 = vadd.xlane.f32.xlu0 %v228
      %v230 = vpop.xlane.xlu0 %229
      %v231 = vsel %vm215, %v214, 0.0
      %232 = vadd.xlane.f32.xlu0 %v231
      %v233 = vpop.xlane.xlu0 %232
      %v234 = vmul.f32 %v203, %v203
      %v235 = vmul.f32 %v204, %v204
      %v236 = vmul.f32 %v205, %v205
      %v237 = vmul.f32 %v206, %v206
      %v238 = vmul.f32 %v207, %v207
      %v239 = vmul.f32 %v208, %v208
      %v240 = vsel %vm215, %v234, 0.0
      %241 = vadd.xlane.f32.xlu0 %v240
      %v242 = vpop.xlane.xlu0 %241
      %v243 = vsel %vm215, %v235, 0.0
      %244 = vadd.xlane.f32.xlu0 %v243
      %v245 = vpop.xlane.xlu0 %244
      %v246 = vsel %vm215, %v236, 0.0
      %247 = vadd.xlane.f32.xlu0 %v246
      %v248 = vpop.xlane.xlu0 %247
      %v249 = vsel %vm215, %v237, 0.0
      %250 = vadd.xlane.f32.xlu0 %v249
      %v251 = vpop.xlane.xlu0 %250
      %v252 = vsel %vm215, %v238, 0.0
      %253 = vadd.xlane.f32.xlu0 %v252
      %v254 = vpop.xlane.xlu0 %253
      %v255 = vsel %vm215, %v239, 0.0
      %256 = vadd.xlane.f32.xlu0 %v255
      %v257 = vpop.xlane.xlu0 %256
      %v258 = vmax.f32 %v218, 1e-24
      %v259 = vmax.f32 %v221, 1e-24
      %v260 = vmax.f32 %v224, 1e-24
      %v261 = vmax.f32 %v227, 1e-24
      %v262 = vmax.f32 %v230, 1e-24
      %v263 = vmax.f32 %v233, 1e-24
      %v264 = vrsqrt.pop %v258
      %v265 = vrsqrt.pop %v259
      %v266 = vrsqrt.pop %v260
      %v267 = vrsqrt.pop %v261
      %v268 = vrsqrt.pop %v262
      %v269 = vrsqrt.pop %v263
      %v270 = vrsqrt.pop %v242
      %v271 = vmul.f32 %v242, %v270
      %vm272 = vcmp.eq.f32.partialorder %v242, inf
      %v273 = vsel %vm272, %v242, %v271
      %vm274 = vcmp.eq.f32.partialorder %v242, 0.0
      %v275 = vand.u32 %v242, 2147483648
      %v276 = vsel %vm274, %v275, %v273
      %v277 = vrsqrt.pop %v245
      %v278 = vmul.f32 %v245, %v277
      %vm279 = vcmp.eq.f32.partialorder %v245, inf
      %v280 = vsel %vm279, %v245, %v278
      %vm281 = vcmp.eq.f32.partialorder %v245, 0.0
      %v282 = vand.u32 %v245, 2147483648
      %v283 = vsel %vm281, %v282, %v280
      %v284 = vrsqrt.pop %v248
      %v285 = vmul.f32 %v248, %v284
      %vm286 = vcmp.eq.f32.partialorder %v248, inf
      %v287 = vsel %vm286, %v248, %v285
      %vm288 = vcmp.eq.f32.partialorder %v248, 0.0
      %v289 = vand.u32 %v248, 2147483648
      %v290 = vsel %vm288, %v289, %v287
      %v291 = vrsqrt.pop %v251
      %v292 = vmul.f32 %v251, %v291
      %vm293 = vcmp.eq.f32.partialorder %v251, inf
      %v294 = vsel %vm293, %v251, %v292
      %vm295 = vcmp.eq.f32.partialorder %v251, 0.0
      %v296 = vand.u32 %v251, 2147483648
      %v297 = vsel %vm295, %v296, %v294
      %v298 = vrsqrt.pop %v254
      %v299 = vmul.f32 %v254, %v298
      %vm300 = vcmp.eq.f32.partialorder %v254, inf
      %v301 = vsel %vm300, %v254, %v299
      %vm302 = vcmp.eq.f32.partialorder %v254, 0.0
      %v303 = vand.u32 %v254, 2147483648
      %v304 = vsel %vm302, %v303, %v301
      %v305 = vrsqrt.pop %v257
      %v306 = vmul.f32 %v257, %v305
      %vm307 = vcmp.eq.f32.partialorder %v257, inf
      %v308 = vsel %vm307, %v257, %v306
      %vm309 = vcmp.eq.f32.partialorder %v257, 0.0
      %v310 = vand.u32 %v257, 2147483648
      %v311 = vsel %vm309, %v310, %v308
      %v312 = vmul.f32 %v276, %v264
      %v313 = vmul.f32 %v283, %v265
      %v314 = vmul.f32 %v290, %v266
      %v315 = vmul.f32 %v297, %v267
      %v316 = vmul.f32 %v304, %v268
      %v317 = vmul.f32 %v311, %v269
      %s318 = sld [smem:[#allocation2]]
      %v319 = vstv %s318
      %v320 = vmul.f32 %v312, %v319
      %v321 = vmul.f32 %v313, %v319
      %v322 = vmul.f32 %v314, %v319
      %v323 = vmul.f32 %v315, %v319
      %v324 = vmul.f32 %v316, %v319
      %v325 = vmul.f32 %v317, %v319
      %v326 = vmul.f32 %v197, %v320
      %v327 = vmul.f32 %v198, %v321
      %v328 = vmul.f32 %v199, %v322
      %v329 = vmul.f32 %v200, %v323
      %v330 = vmul.f32 %v201, %v324
      %v331 = vmul.f32 %v202, %v325
      %332 = vst.msk [vmem:[%s195] sm:$0xff] %vm215, %v326
      %333 = vst.msk [vmem:[%s195 + $0x8] sm:$0xff] %vm215, %v327
      %334 = vst.msk [vmem:[%s195 + $0x10] sm:$0xff] %vm215, %v328
      %335 = vst.msk [vmem:[%s195 + $0x18] sm:$0xff] %vm215, %v329
      %336 = vst.msk [vmem:[%s195 + $0x20] sm:$0xff] %vm215, %v330
      %337 = vst.msk [vmem:[%s195 + $0x28] sm:$0xff] %vm215, %v331
      %s338 = smul.u32 6, %s15
      %p339 = scmp.lt.s32.totalorder %s338, 17
      %s340 = scalar_select %p339, %s338, 17
      %s341 = smul.addr %s340, 8
      %s342 = scalar_lea.vmem %s3, %s341
      // Predicated region
      $region33: #{message_norm.1} parent=31 // pred_check
        %p343 = pneg %p106
      $region34: #{message_norm.1} parent=31 // pred_check_branch
        %345 = sbr.rel (%p343) target = $region36
      $region35: #{message_norm.1} parent=31 // pred_region
        %s346 = smul.u32 6, %s15
      $region36: #{message_norm.1} parent=31 // pred_fallthru
        _
    $region32: #{message_norm.1} parent=5 // pred_fallthru
      _
    %p347 = scmp.le.s32.totalorder 2, %s10
    // Predicated region
    $region37: #{message_norm.1} parent=5 // pred_check
      %p348 = pneg %p347
    $region38: #{message_norm.1} parent=5 // pred_check_branch
      %350 = sbr.rel (%p348) target = $region40
    $region39: #{message_norm.1} parent=5 // pred_region
      %s351 = ssub.s32 %s10, 2
      // Predicated region
      $region41: #{message_norm.1} parent=39 // pred_check
        %p352 = pneg %p112
      $region42: #{message_norm.1} parent=39 // pred_check_branch
        %354 = sbr.rel (%p352) target = $region44
      $region43: #{message_norm.1} parent=39 // pred_region
        %s355 = smul.u32 6, %s16
        %p356 = scmp.lt.s32.totalorder %s355, 17
        %s357 = scalar_select %p356, %s355, 17
        %s358 = smul.addr %s357, 8
        %s359 = scalar_lea.vmem %s3, %s358
      $region44: #{message_norm.1} parent=39 // pred_fallthru
        _
    $region40: #{message_norm.1} parent=5 // pred_fallthru
      _
  $region6: #{message_norm.1} parent=0 // loop_footer
    %s14 = sadd.s32 1, %s10
  $region7: #{message_norm.1} parent=0 // loop_footer_branch
    %9 = sbr.rel target = $region3
  $region8: #{message_norm.1} parent=0 // loop_exit
    _

</llo_original>
